<compile_context>
chip_gen: v5e
topology: v5e:2x2
jax: 0.10.0
libtpu: 0.0.40
codegen_flags: <defaults>
</compile_context>

<pallas_src>
import functools

import jax
import jax.numpy as jnp
from jax.experimental import pallas as pl
from jax.experimental.pallas import tpu as pltpu


def _round_up(x, m):
    return (x + m - 1) // m * m


def bert_embedding_kernel(ids_smem,                    # scalar prefetch: (n_pad,) int32 in SMEM
                          tt_ref, pid_ref,             # (TM, 1) int32 token_type / position ids
                          word_hbm,                    # full (vocab, H) word table in HBM
                          type_tab_ref, pos_tab_ref,   # small tables resident in VMEM
                          gamma_ref, beta_ref,         # (1, H) LayerNorm params
                          out_ref,                     # (TM, H) output tile
                          wrow_ref, dma_sems,          # scratch: (TM, H) VMEM + chunk-slot DMA sems
                          *, tm, ch, lookahead, eps):
    tile = pl.program_id(0)
    base = tile * tm

    n_chunks = tm // ch
    n_slots = lookahead + 1            # chunk c's slot is drained before chunk c+n_slots is issued

    tv = type_tab_ref.shape[0]
    pv = pos_tab_ref.shape[0]

    # Hoisted loop invariants (avoid re-casting / re-broadcasting per chunk).
    g = gamma_ref[...].astype(jnp.float32)
    b = beta_ref[...].astype(jnp.float32)

    # ---------------------------------------------------------------- DMA helpers
    def issue_chunk(c, slot):
        # Issue `ch` row DMAs (HBM word row -> VMEM scratch row), all signalling
        # the same semaphore slot.  Static Python loop -> fully unrolled
        # descriptor builds the LLO scheduler can interleave.
        row0 = c * ch
        for r in range(ch):
            t = row0 + r
            row = ids_smem[base + t]
            pltpu.make_async_copy(word_hbm.at[row], wrow_ref.at[t],
                                  dma_sems.at[slot]).start()

    def wait_chunk(c, slot):
        # Single wait per chunk: the descriptor spans `ch` rows so its byte count
        # equals the sum of the ch per-row DMAs that signalled this slot.
        row0 = pl.multiple_of(c * ch, ch)
        pltpu.make_async_copy(word_hbm.at[pl.ds(0, ch)],
                              wrow_ref.at[pl.ds(row0, ch)],
                              dma_sems.at[slot]).wait()

    # ---------------------------------------------------------------- compute
    def compute_chunk(c):
        row0 = pl.multiple_of(c * ch, ch)
        x = wrow_ref[pl.ds(row0, ch), :].astype(jnp.float32)            # (ch, H)

        # token_type / position lookups as one-hot matmuls against the resident
        # VMEM tables (MXU is otherwise idle).  One-hot dtype matches the table.
        tt = tt_ref[pl.ds(row0, ch), :]                                  # (ch, 1)
        pp = pid_ref[pl.ds(row0, ch), :]
        tt_oh = (tt == jax.lax.broadcasted_iota(jnp.int32, (ch, tv), 1)
                 ).astype(type_tab_ref.dtype)
        pp_oh = (pp == jax.lax.broadcasted_iota(jnp.int32, (ch, pv), 1)
                 ).astype(pos_tab_ref.dtype)
        x = x + jnp.dot(tt_oh, type_tab_ref[...], preferred_element_type=jnp.float32)
        x = x + jnp.dot(pp_oh, pos_tab_ref[...], preferred_element_type=jnp.float32)
        # TODO(synk): for very large max_position_embeddings replace the (ch, PV)
        # position one-hot with a direct slice/gather of the resident pos table.

        # LayerNorm over hidden, f32 statistics.
        mean = jnp.mean(x, axis=-1, keepdims=True)
        xc = x - mean
        var = jnp.mean(xc * xc, axis=-1, keepdims=True)
        y = xc * jax.lax.rsqrt(var + eps) * g + b
        out_ref[pl.ds(row0, ch), :] = y.astype(out_ref.dtype)

    # ---------------------------------------------------------------- pipeline
    for c0 in range(min(lookahead, n_chunks)):          # static prologue
        issue_chunk(c0, c0 % n_slots)

    @pl.loop(0, n_chunks)
    def _(c):
        # Issue the lookahead chunk *before* waiting on the current one so the
        # scalar unit's SMEM id reads / descriptor builds are not stalled by the
        # wait.  Its slot was drained n_slots chunks ago, so this is race-free.
        @pl.when(c + lookahead < n_chunks)
        def _():
            issue_chunk(c + lookahead, (c + lookahead) % n_slots)

        wait_chunk(c, c % n_slots)
        compute_chunk(c)                                 # overlaps later chunks' DMAs


def bert_embedding(input_ids, token_type_ids, position_ids,
                   word_emb, type_emb, pos_emb, gamma, beta,
                   eps=1e-12, tm=512, chunk=64, dma_lookahead=2):
    orig_shape = input_ids.shape
    ids = input_ids.reshape(-1).astype(jnp.int32)
    tts = token_type_ids.reshape(-1).astype(jnp.int32)
    pos = position_ids.reshape(-1).astype(jnp.int32)
    n_tok = ids.shape[0]
    hidden = word_emb.shape[1]
    itemsize = word_emb.dtype.itemsize

    # --- token tile size --------------------------------------------------------
    tm = max(8, min(tm, _round_up(n_tok, 8)))
    tm = _round_up(tm, 8)
    # v7x megacore: prefer >= 2 token tiles so the 'parallel' axis can be sharded
    # across both TensorCores.
    if _round_up(n_tok, tm) == tm and tm > 8:
        tm = _round_up(max(8, tm // 2), 8)
    n_pad = _round_up(n_tok, tm)
    pad = n_pad - n_tok

    # --- gather chunk (compute/DMA overlap granularity) --------------------------
    ch = max(8, min(_round_up(chunk, 8), tm))
    while tm % ch:           # ch must divide tm; terminates at 8 (tm is a mult. of 8)
        ch -= 8
    lookahead = max(1, int(dma_lookahead))

    ids_p = jnp.pad(ids, (0, pad))                              # pad rows -> id 0 (valid row)
    tts_p = jnp.pad(tts, (0, pad)).reshape(n_pad, 1)
    pos_p = jnp.pad(pos, (0, pad)).reshape(n_pad, 1)
    gamma2 = gamma.reshape(1, hidden)
    beta2 = beta.reshape(1, hidden)

    grid_spec = pltpu.PrefetchScalarGridSpec(
        num_scalar_prefetch=1,                                  # input_ids -> SMEM
        grid=(n_pad // tm,),
        in_specs=[
            pl.BlockSpec((tm, 1), lambda i, ids: (i, 0)),       # token_type ids (vector form)
            pl.BlockSpec((tm, 1), lambda i, ids: (i, 0)),       # position ids (vector form)
            pl.BlockSpec(memory_space=pl.ANY),                  # word table stays in HBM
            pl.BlockSpec(type_emb.shape, lambda i, ids: (0, 0)),  # resident in VMEM
            pl.BlockSpec(pos_emb.shape, lambda i, ids: (0, 0)),   # resident in VMEM
            pl.BlockSpec((1, hidden), lambda i, ids: (0, 0)),   # gamma
            pl.BlockSpec((1, hidden), lambda i, ids: (0, 0)),   # beta
        ],
        out_specs=pl.BlockSpec((tm, hidden), lambda i, ids: (i, 0)),
        scratch_shapes=[
            pltpu.VMEM((tm, hidden), word_emb.dtype),           # gathered word rows
            pltpu.SemaphoreType.DMA((lookahead + 1,)),          # one sem per in-flight chunk slot
        ],
    )

    # Explicit VMEM budget (2x out buffers + wrow scratch + resident tables + f32
    # chunk temporaries) with margin, clamped so it stays valid on v7x (64 MiB/TC).
    tv, pv = int(type_emb.shape[0]), int(pos_emb.shape[0])
    vmem_est = (3 * tm * hidden * itemsize
                + int(type_emb.size) * type_emb.dtype.itemsize
                + int(pos_emb.size) * pos_emb.dtype.itemsize
                + 6 * ch * hidden * 4 + 4 * ch * (tv + pv)
                + (2 << 20))
    vmem_limit = int(min(max(2 * vmem_est, 16 << 20), 40 << 20))

    # The manual row-DMA traffic is invisible to XLA -> expose it via CostEstimate.
    cost = pl.CostEstimate(
        flops=int(2 * n_pad * hidden * (tv + pv) + 10 * n_pad * hidden),
        transcendentals=int(n_pad),
        bytes_accessed=int(2 * n_pad * hidden * itemsize + 3 * n_pad * 4
                           + (int(type_emb.size) + int(pos_emb.size) + 2 * hidden) * 4),
    )

    out = pl.pallas_call(
        functools.partial(bert_embedding_kernel, tm=tm, ch=ch,
                          lookahead=lookahead, eps=eps),
        grid_spec=grid_spec,
        out_shape=jax.ShapeDtypeStruct((n_pad, hidden), word_emb.dtype),
        compiler_params=pltpu.CompilerParams(
            dimension_semantics=("parallel",),
            vmem_limit_bytes=vmem_limit),
        cost_estimate=cost,
    )(ids_p, tts_p, pos_p, word_emb, type_emb, pos_emb, gamma2, beta2)

    return out[:n_tok].reshape(*orig_shape, hidden)


def reference(input_ids, token_type_ids, position_ids,
              word_emb, type_emb, pos_emb, gamma, beta, eps=1e-12):
    x = (word_emb[input_ids] + type_emb[token_type_ids]
         + pos_emb[position_ids]).astype(jnp.float32)
    mean = jnp.mean(x, axis=-1, keepdims=True)
    var = jnp.mean((x - mean) ** 2, axis=-1, keepdims=True)
    return (x - mean) * jax.lax.rsqrt(var + eps) * gamma + beta


if __name__ == "__main__":
    # Small BertConfig-like sizes.
    batch, seq = 2, 8
    vocab_size = 64
    type_vocab_size = 2
    max_position_embeddings = 32
    hidden_size = 128
    layer_norm_eps = 1e-12

    key = jax.random.PRNGKey(0)
    k_word, k_type, k_pos, k_ids, k_tt, k_g, k_b = jax.random.split(key, 7)

    word_emb = jax.random.normal(k_word, (vocab_size, hidden_size), jnp.float32) * 0.02
    type_emb = jax.random.normal(k_type, (type_vocab_size, hidden_size), jnp.float32) * 0.02
    pos_emb = jax.random.normal(k_pos, (max_position_embeddings, hidden_size), jnp.float32) * 0.02
    gamma = 1.0 + 0.1 * jax.random.normal(k_g, (hidden_size,), jnp.float32)
    beta = 0.1 * jax.random.normal(k_b, (hidden_size,), jnp.float32)

    input_ids = jax.random.randint(k_ids, (batch, seq), 0, vocab_size, jnp.int32)
    token_type_ids = jax.random.randint(k_tt, (batch, seq), 0, type_vocab_size, jnp.int32)
    position_ids = jnp.broadcast_to(jnp.arange(seq, dtype=jnp.int32)[None, :], (batch, seq))
    seq_lens = jnp.full((batch,), seq, jnp.int32)  # unused by forward (API parity)

    out = bert_embedding(input_ids, token_type_ids, position_ids,
                         word_emb, type_emb, pos_emb, gamma, beta,
                         eps=layer_norm_eps)
    out = jax.block_until_ready(out)

    ref = reference(input_ids, token_type_ids, position_ids,
                    word_emb, type_emb, pos_emb, gamma, beta, eps=layer_norm_eps)
    assert out.shape == (batch, seq, hidden_size)
    assert jnp.allclose(out, ref, atol=1e-5, rtol=1e-5), "mismatch vs reference"

    print("KERNEL_OK")
</pallas_src>

<mosaic_0001>
module attributes {stable_mosaic.version = 11 : i64} {
  func.func @bert_embedding_kernel(%arg0: i32, %arg1: memref<16xi32, #tpu.memory_space<smem>>, %arg2: memref<8x1xi32, #tpu.memory_space<vmem>>, %arg3: memref<8x1xi32, #tpu.memory_space<vmem>>, %arg4: memref<64x128xf32, #tpu.memory_space<any>>, %arg5: memref<2x128xf32, #tpu.memory_space<vmem>>, %arg6: memref<32x128xf32, #tpu.memory_space<vmem>>, %arg7: memref<1x128xf32, #tpu.memory_space<vmem>>, %arg8: memref<1x128xf32, #tpu.memory_space<vmem>>, %arg9: memref<8x128xf32, #tpu.memory_space<vmem>>, %arg10: memref<8x128xf32, #tpu.memory_space<vmem>>, %arg11: memref<3x!tpu.dma_semaphore, #tpu.memory_space<semaphore_mem>>) attributes {dimension_semantics = [#tpu.dimension_semantics<parallel>], iteration_bounds = array<i64: 2>, scalar_prefetch = 1 : i64, scratch_operands = 2 : i64, tpu.core_type = #tpu.core_type<tc>, window_params = [{transform_indices = @transform_0, window_bounds = array<i64: 8, 1>}, {transform_indices = @transform_1, window_bounds = array<i64: 8, 1>}, {}, {pipeline_mode = #tpu.pipeline_mode<synchronous>, transform_indices = @transform_3, window_bounds = array<i64: 2, 128>}, {pipeline_mode = #tpu.pipeline_mode<synchronous>, transform_indices = @transform_4, window_bounds = array<i64: 32, 128>}, {pipeline_mode = #tpu.pipeline_mode<synchronous>, transform_indices = @transform_5, window_bounds = array<i64: 1, 128>}, {pipeline_mode = #tpu.pipeline_mode<synchronous>, transform_indices = @transform_6, window_bounds = array<i64: 1, 128>}, {transform_indices = @transform_7, window_bounds = array<i64: 8, 128>}]} {
    %c8_i32 = arith.constant 8 : i32
    %0 = arith.muli %arg0, %c8_i32 : i32
    %c0 = arith.constant 0 : index
    %c0_0 = arith.constant 0 : index
    %1 = vector.load %arg7[%c0, %c0_0] : memref<1x128xf32, #tpu.memory_space<vmem>>, vector<1x128xf32>
    %c0_1 = arith.constant 0 : index
    %c0_2 = arith.constant 0 : index
    %2 = vector.load %arg8[%c0_1, %c0_2] : memref<1x128xf32, #tpu.memory_space<vmem>>, vector<1x128xf32>
    %c0_i32 = arith.constant 0 : i32
    %3 = arith.addi %0, %c0_i32 : i32
    %4 = arith.index_cast %3 : i32 to index
    %5 = memref.load %arg1[%4] : memref<16xi32, #tpu.memory_space<smem>>
    %c0_i32_3 = arith.constant 0 : i32
    %c0_i32_4 = arith.constant 0 : i32
    %c0_i32_5 = arith.constant 0 : i32
    %6 = tpu.memref_slice %arg4[%5, %c0_i32_5] : memref<64x128xf32, #tpu.memory_space<any>> -> memref<1x128xf32, #tpu.memory_space<any>>
    %7 = tpu.memref_squeeze %6 : memref<1x128xf32, #tpu.memory_space<any>> -> memref<128xf32, #tpu.memory_space<any>>
    %c0_i32_6 = arith.constant 0 : i32
    %8 = tpu.memref_slice %arg10[%c0_i32_3, %c0_i32_6] : memref<8x128xf32, #tpu.memory_space<vmem>> -> memref<1x128xf32, #tpu.memory_space<vmem>>
    %9 = tpu.memref_squeeze %8 : memref<1x128xf32, #tpu.memory_space<vmem>> -> memref<128xf32, #tpu.memory_space<vmem>>
    %10 = tpu.memref_slice %arg11[%c0_i32_4] : memref<3x!tpu.dma_semaphore, #tpu.memory_space<semaphore_mem>> -> memref<1x!tpu.dma_semaphore, #tpu.memory_space<semaphore_mem>>
    %11 = tpu.memref_squeeze %10 : memref<1x!tpu.dma_semaphore, #tpu.memory_space<semaphore_mem>> -> memref<!tpu.dma_semaphore, #tpu.memory_space<semaphore_mem>>
    tpu.enqueue_dma source(%7 : memref<128xf32, #tpu.memory_space<any>>) target(%9 : memref<128xf32, #tpu.memory_space<vmem>>) target_semaphore(%11 : memref<!tpu.dma_semaphore, #tpu.memory_space<semaphore_mem>>)
    %c1_i32 = arith.constant 1 : i32
    %12 = arith.addi %0, %c1_i32 : i32
    %13 = arith.index_cast %12 : i32 to index
    %14 = memref.load %arg1[%13] : memref<16xi32, #tpu.memory_space<smem>>
    %c1_i32_7 = arith.constant 1 : i32
    %c0_i32_8 = arith.constant 0 : i32
    %c0_i32_9 = arith.constant 0 : i32
    %15 = tpu.memref_slice %arg4[%14, %c0_i32_9] : memref<64x128xf32, #tpu.memory_space<any>> -> memref<1x128xf32, #tpu.memory_space<any>>
    %16 = tpu.memref_squeeze %15 : memref<1x128xf32, #tpu.memory_space<any>> -> memref<128xf32, #tpu.memory_space<any>>
    %c0_i32_10 = arith.constant 0 : i32
    %17 = tpu.memref_slice %arg10[%c1_i32_7, %c0_i32_10] : memref<8x128xf32, #tpu.memory_space<vmem>> -> memref<1x128xf32, #tpu.memory_space<vmem>>
    %18 = tpu.memref_squeeze %17 : memref<1x128xf32, #tpu.memory_space<vmem>> -> memref<128xf32, #tpu.memory_space<vmem>>
    %19 = tpu.memref_slice %arg11[%c0_i32_8] : memref<3x!tpu.dma_semaphore, #tpu.memory_space<semaphore_mem>> -> memref<1x!tpu.dma_semaphore, #tpu.memory_space<semaphore_mem>>
    %20 = tpu.memref_squeeze %19 : memref<1x!tpu.dma_semaphore, #tpu.memory_space<semaphore_mem>> -> memref<!tpu.dma_semaphore, #tpu.memory_space<semaphore_mem>>
    tpu.enqueue_dma source(%16 : memref<128xf32, #tpu.memory_space<any>>) target(%18 : memref<128xf32, #tpu.memory_space<vmem>>) target_semaphore(%20 : memref<!tpu.dma_semaphore, #tpu.memory_space<semaphore_mem>>)
    %c2_i32 = arith.constant 2 : i32
    %21 = arith.addi %0, %c2_i32 : i32
    %22 = arith.index_cast %21 : i32 to index
    %23 = memref.load %arg1[%22] : memref<16xi32, #tpu.memory_space<smem>>
    %c2_i32_11 = arith.constant 2 : i32
    %c0_i32_12 = arith.constant 0 : i32
    %c0_i32_13 = arith.constant 0 : i32
    %24 = tpu.memref_slice %arg4[%23, %c0_i32_13] : memref<64x128xf32, #tpu.memory_space<any>> -> memref<1x128xf32, #tpu.memory_space<any>>
    %25 = tpu.memref_squeeze %24 : memref<1x128xf32, #tpu.memory_space<any>> -> memref<128xf32, #tpu.memory_space<any>>
    %c0_i32_14 = arith.constant 0 : i32
    %26 = tpu.memref_slice %arg10[%c2_i32_11, %c0_i32_14] : memref<8x128xf32, #tpu.memory_space<vmem>> -> memref<1x128xf32, #tpu.memory_space<vmem>>
    %27 = tpu.memref_squeeze %26 : memref<1x128xf32, #tpu.memory_space<vmem>> -> memref<128xf32, #tpu.memory_space<vmem>>
    %28 = tpu.memref_slice %arg11[%c0_i32_12] : memref<3x!tpu.dma_semaphore, #tpu.memory_space<semaphore_mem>> -> memref<1x!tpu.dma_semaphore, #tpu.memory_space<semaphore_mem>>
    %29 = tpu.memref_squeeze %28 : memref<1x!tpu.dma_semaphore, #tpu.memory_space<semaphore_mem>> -> memref<!tpu.dma_semaphore, #tpu.memory_space<semaphore_mem>>
    tpu.enqueue_dma source(%25 : memref<128xf32, #tpu.memory_space<any>>) target(%27 : memref<128xf32, #tpu.memory_space<vmem>>) target_semaphore(%29 : memref<!tpu.dma_semaphore, #tpu.memory_space<semaphore_mem>>)
    %c3_i32 = arith.constant 3 : i32
    %30 = arith.addi %0, %c3_i32 : i32
    %31 = arith.index_cast %30 : i32 to index
    %32 = memref.load %arg1[%31] : memref<16xi32, #tpu.memory_space<smem>>
    %c3_i32_15 = arith.constant 3 : i32
    %c0_i32_16 = arith.constant 0 : i32
    %c0_i32_17 = arith.constant 0 : i32
    %33 = tpu.memref_slice %arg4[%32, %c0_i32_17] : memref<64x128xf32, #tpu.memory_space<any>> -> memref<1x128xf32, #tpu.memory_space<any>>
    %34 = tpu.memref_squeeze %33 : memref<1x128xf32, #tpu.memory_space<any>> -> memref<128xf32, #tpu.memory_space<any>>
    %c0_i32_18 = arith.constant 0 : i32
    %35 = tpu.memref_slice %arg10[%c3_i32_15, %c0_i32_18] : memref<8x128xf32, #tpu.memory_space<vmem>> -> memref<1x128xf32, #tpu.memory_space<vmem>>
    %36 = tpu.memref_squeeze %35 : memref<1x128xf32, #tpu.memory_space<vmem>> -> memref<128xf32, #tpu.memory_space<vmem>>
    %37 = tpu.memref_slice %arg11[%c0_i32_16] : memref<3x!tpu.dma_semaphore, #tpu.memory_space<semaphore_mem>> -> memref<1x!tpu.dma_semaphore, #tpu.memory_space<semaphore_mem>>
    %38 = tpu.memref_squeeze %37 : memref<1x!tpu.dma_semaphore, #tpu.memory_space<semaphore_mem>> -> memref<!tpu.dma_semaphore, #tpu.memory_space<semaphore_mem>>
    tpu.enqueue_dma source(%34 : memref<128xf32, #tpu.memory_space<any>>) target(%36 : memref<128xf32, #tpu.memory_space<vmem>>) target_semaphore(%38 : memref<!tpu.dma_semaphore, #tpu.memory_space<semaphore_mem>>)
    %c4_i32 = arith.constant 4 : i32
    %39 = arith.addi %0, %c4_i32 : i32
    %40 = arith.index_cast %39 : i32 to index
    %41 = memref.load %arg1[%40] : memref<16xi32, #tpu.memory_space<smem>>
    %c4_i32_19 = arith.constant 4 : i32
    %c0_i32_20 = arith.constant 0 : i32
    %c0_i32_21 = arith.constant 0 : i32
    %42 = tpu.memref_slice %arg4[%41, %c0_i32_21] : memref<64x128xf32, #tpu.memory_space<any>> -> memref<1x128xf32, #tpu.memory_space<any>>
    %43 = tpu.memref_squeeze %42 : memref<1x128xf32, #tpu.memory_space<any>> -> memref<128xf32, #tpu.memory_space<any>>
    %c0_i32_22 = arith.constant 0 : i32
    %44 = tpu.memref_slice %arg10[%c4_i32_19, %c0_i32_22] : memref<8x128xf32, #tpu.memory_space<vmem>> -> memref<1x128xf32, #tpu.memory_space<vmem>>
    %45 = tpu.memref_squeeze %44 : memref<1x128xf32, #tpu.memory_space<vmem>> -> memref<128xf32, #tpu.memory_space<vmem>>
    %46 = tpu.memref_slice %arg11[%c0_i32_20] : memref<3x!tpu.dma_semaphore, #tpu.memory_space<semaphore_mem>> -> memref<1x!tpu.dma_semaphore, #tpu.memory_space<semaphore_mem>>
    %47 = tpu.memref_squeeze %46 : memref<1x!tpu.dma_semaphore, #tpu.memory_space<semaphore_mem>> -> memref<!tpu.dma_semaphore, #tpu.memory_space<semaphore_mem>>
    tpu.enqueue_dma source(%43 : memref<128xf32, #tpu.memory_space<any>>) target(%45 : memref<128xf32, #tpu.memory_space<vmem>>) target_semaphore(%47 : memref<!tpu.dma_semaphore, #tpu.memory_space<semaphore_mem>>)
    %c5_i32 = arith.constant 5 : i32
    %48 = arith.addi %0, %c5_i32 : i32
    %49 = arith.index_cast %48 : i32 to index
    %50 = memref.load %arg1[%49] : memref<16xi32, #tpu.memory_space<smem>>
    %c5_i32_23 = arith.constant 5 : i32
    %c0_i32_24 = arith.constant 0 : i32
    %c0_i32_25 = arith.constant 0 : i32
    %51 = tpu.memref_slice %arg4[%50, %c0_i32_25] : memref<64x128xf32, #tpu.memory_space<any>> -> memref<1x128xf32, #tpu.memory_space<any>>
    %52 = tpu.memref_squeeze %51 : memref<1x128xf32, #tpu.memory_space<any>> -> memref<128xf32, #tpu.memory_space<any>>
    %c0_i32_26 = arith.constant 0 : i32
    %53 = tpu.memref_slice %arg10[%c5_i32_23, %c0_i32_26] : memref<8x128xf32, #tpu.memory_space<vmem>> -> memref<1x128xf32, #tpu.memory_space<vmem>>
    %54 = tpu.memref_squeeze %53 : memref<1x128xf32, #tpu.memory_space<vmem>> -> memref<128xf32, #tpu.memory_space<vmem>>
    %55 = tpu.memref_slice %arg11[%c0_i32_24] : memref<3x!tpu.dma_semaphore, #tpu.memory_space<semaphore_mem>> -> memref<1x!tpu.dma_semaphore, #tpu.memory_space<semaphore_mem>>
    %56 = tpu.memref_squeeze %55 : memref<1x!tpu.dma_semaphore, #tpu.memory_space<semaphore_mem>> -> memref<!tpu.dma_semaphore, #tpu.memory_space<semaphore_mem>>
    tpu.enqueue_dma source(%52 : memref<128xf32, #tpu.memory_space<any>>) target(%54 : memref<128xf32, #tpu.memory_space<vmem>>) target_semaphore(%56 : memref<!tpu.dma_semaphore, #tpu.memory_space<semaphore_mem>>)
    %c6_i32 = arith.constant 6 : i32
    %57 = arith.addi %0, %c6_i32 : i32
    %58 = arith.index_cast %57 : i32 to index
    %59 = memref.load %arg1[%58] : memref<16xi32, #tpu.memory_space<smem>>
    %c6_i32_27 = arith.constant 6 : i32
    %c0_i32_28 = arith.constant 0 : i32
    %c0_i32_29 = arith.constant 0 : i32
    %60 = tpu.memref_slice %arg4[%59, %c0_i32_29] : memref<64x128xf32, #tpu.memory_space<any>> -> memref<1x128xf32, #tpu.memory_space<any>>
    %61 = tpu.memref_squeeze %60 : memref<1x128xf32, #tpu.memory_space<any>> -> memref<128xf32, #tpu.memory_space<any>>
    %c0_i32_30 = arith.constant 0 : i32
    %62 = tpu.memref_slice %arg10[%c6_i32_27, %c0_i32_30] : memref<8x128xf32, #tpu.memory_space<vmem>> -> memref<1x128xf32, #tpu.memory_space<vmem>>
    %63 = tpu.memref_squeeze %62 : memref<1x128xf32, #tpu.memory_space<vmem>> -> memref<128xf32, #tpu.memory_space<vmem>>
    %64 = tpu.memref_slice %arg11[%c0_i32_28] : memref<3x!tpu.dma_semaphore, #tpu.memory_space<semaphore_mem>> -> memref<1x!tpu.dma_semaphore, #tpu.memory_space<semaphore_mem>>
    %65 = tpu.memref_squeeze %64 : memref<1x!tpu.dma_semaphore, #tpu.memory_space<semaphore_mem>> -> memref<!tpu.dma_semaphore, #tpu.memory_space<semaphore_mem>>
    tpu.enqueue_dma source(%61 : memref<128xf32, #tpu.memory_space<any>>) target(%63 : memref<128xf32, #tpu.memory_space<vmem>>) target_semaphore(%65 : memref<!tpu.dma_semaphore, #tpu.memory_space<semaphore_mem>>)
    %c7_i32 = arith.constant 7 : i32
    %66 = arith.addi %0, %c7_i32 : i32
    %67 = arith.index_cast %66 : i32 to index
    %68 = memref.load %arg1[%67] : memref<16xi32, #tpu.memory_space<smem>>
    %c7_i32_31 = arith.constant 7 : i32
    %c0_i32_32 = arith.constant 0 : i32
    %c0_i32_33 = arith.constant 0 : i32
    %69 = tpu.memref_slice %arg4[%68, %c0_i32_33] : memref<64x128xf32, #tpu.memory_space<any>> -> memref<1x128xf32, #tpu.memory_space<any>>
    %70 = tpu.memref_squeeze %69 : memref<1x128xf32, #tpu.memory_space<any>> -> memref<128xf32, #tpu.memory_space<any>>
    %c0_i32_34 = arith.constant 0 : i32
    %71 = tpu.memref_slice %arg10[%c7_i32_31, %c0_i32_34] : memref<8x128xf32, #tpu.memory_space<vmem>> -> memref<1x128xf32, #tpu.memory_space<vmem>>
    %72 = tpu.memref_squeeze %71 : memref<1x128xf32, #tpu.memory_space<vmem>> -> memref<128xf32, #tpu.memory_space<vmem>>
    %73 = tpu.memref_slice %arg11[%c0_i32_32] : memref<3x!tpu.dma_semaphore, #tpu.memory_space<semaphore_mem>> -> memref<1x!tpu.dma_semaphore, #tpu.memory_space<semaphore_mem>>
    %74 = tpu.memref_squeeze %73 : memref<1x!tpu.dma_semaphore, #tpu.memory_space<semaphore_mem>> -> memref<!tpu.dma_semaphore, #tpu.memory_space<semaphore_mem>>
    tpu.enqueue_dma source(%70 : memref<128xf32, #tpu.memory_space<any>>) target(%72 : memref<128xf32, #tpu.memory_space<vmem>>) target_semaphore(%74 : memref<!tpu.dma_semaphore, #tpu.memory_space<semaphore_mem>>)
    %c0_i32_35 = arith.constant 0 : i32
    %c1_i32_36 = arith.constant 1 : i32
    %75 = arith.muli %c0_i32_35, %c1_i32_36 : i32
    %c0_i32_37 = arith.constant 0 : i32
    %76 = arith.addi %c0_i32_37, %75 : i32
    %c2_i32_38 = arith.constant 2 : i32
    %77 = arith.addi %76, %c2_i32_38 : i32
    %c1_i32_39 = arith.constant 1 : i32
    %78 = arith.cmpi slt, %77, %c1_i32_39 : i32
    %79 = arith.extui %78 : i1 to i32
    %c0_i32_40 = arith.constant 0 : i32
    %80 = arith.cmpi ne, %79, %c0_i32_40 : i32
    scf.if %80 {
      %c2_i32_67 = arith.constant 2 : i32
      %143 = arith.addi %76, %c2_i32_67 : i32
      %c2_i32_68 = arith.constant 2 : i32
      %144 = arith.addi %76, %c2_i32_68 : i32
      %c3_i32_69 = arith.constant 3 : i32
      %c0_i32_70 = arith.constant 0 : i32
      %145 = arith.cmpi eq, %c3_i32_69, %c0_i32_70 : i32
      %c1_i32_71 = arith.constant 1 : i32
      %146 = arith.select %145, %c1_i32_71, %c3_i32_69 : i32
      %147 = arith.remsi %144, %146 : i32
      %c0_i32_72 = arith.constant 0 : i32
      %148 = arith.cmpi ne, %147, %c0_i32_72 : i32
      %c0_i32_73 = arith.constant 0 : i32
      %149 = arith.cmpi slt, %147, %c0_i32_73 : i32
      %c0_i32_74 = arith.constant 0 : i32
      %150 = arith.cmpi slt, %146, %c0_i32_74 : i32
      %151 = arith.xori %149, %150 : i1
      %152 = arith.andi %151, %148 : i1
      %153 = arith.addi %147, %146 : i32
      %154 = arith.select %152, %153, %147 : i32
      %c8_i32_75 = arith.constant 8 : i32
      %155 = arith.muli %143, %c8_i32_75 : i32
      %c0_i32_76 = arith.constant 0 : i32
      %156 = arith.addi %155, %c0_i32_76 : i32
      %157 = arith.addi %0, %156 : i32
      %158 = arith.index_cast %157 : i32 to index
      %159 = memref.load %arg1[%158] : memref<16xi32, #tpu.memory_space<smem>>
      %c0_i32_77 = arith.constant 0 : i32
      %160 = tpu.memref_slice %arg4[%159, %c0_i32_77] : memref<64x128xf32, #tpu.memory_space<any>> -> memref<1x128xf32, #tpu.memory_space<any>>
      %161 = tpu.memref_squeeze %160 : memref<1x128xf32, #tpu.memory_space<any>> -> memref<128xf32, #tpu.memory_space<any>>
      %c0_i32_78 = arith.constant 0 : i32
      %162 = tpu.memref_slice %arg10[%156, %c0_i32_78] : memref<8x128xf32, #tpu.memory_space<vmem>> -> memref<1x128xf32, #tpu.memory_space<vmem>>
      %163 = tpu.memref_squeeze %162 : memref<1x128xf32, #tpu.memory_space<vmem>> -> memref<128xf32, #tpu.memory_space<vmem>>
      %164 = tpu.memref_slice %arg11[%154] : memref<3x!tpu.dma_semaphore, #tpu.memory_space<semaphore_mem>> -> memref<1x!tpu.dma_semaphore, #tpu.memory_space<semaphore_mem>>
      %165 = tpu.memref_squeeze %164 : memref<1x!tpu.dma_semaphore, #tpu.memory_space<semaphore_mem>> -> memref<!tpu.dma_semaphore, #tpu.memory_space<semaphore_mem>>
      tpu.enqueue_dma source(%161 : memref<128xf32, #tpu.memory_space<any>>) target(%163 : memref<128xf32, #tpu.memory_space<vmem>>) target_semaphore(%165 : memref<!tpu.dma_semaphore, #tpu.memory_space<semaphore_mem>>)
      %c1_i32_79 = arith.constant 1 : i32
      %166 = arith.addi %155, %c1_i32_79 : i32
      %167 = arith.addi %0, %166 : i32
      %168 = arith.index_cast %167 : i32 to index
      %169 = memref.load %arg1[%168] : memref<16xi32, #tpu.memory_space<smem>>
      %c0_i32_80 = arith.constant 0 : i32
      %170 = tpu.memref_slice %arg4[%169, %c0_i32_80] : memref<64x128xf32, #tpu.memory_space<any>> -> memref<1x128xf32, #tpu.memory_space<any>>
      %171 = tpu.memref_squeeze %170 : memref<1x128xf32, #tpu.memory_space<any>> -> memref<128xf32, #tpu.memory_space<any>>
      %c0_i32_81 = arith.constant 0 : i32
      %172 = tpu.memref_slice %arg10[%166, %c0_i32_81] : memref<8x128xf32, #tpu.memory_space<vmem>> -> memref<1x128xf32, #tpu.memory_space<vmem>>
      %173 = tpu.memref_squeeze %172 : memref<1x128xf32, #tpu.memory_space<vmem>> -> memref<128xf32, #tpu.memory_space<vmem>>
      %174 = tpu.memref_slice %arg11[%154] : memref<3x!tpu.dma_semaphore, #tpu.memory_space<semaphore_mem>> -> memref<1x!tpu.dma_semaphore, #tpu.memory_space<semaphore_mem>>
      %175 = tpu.memref_squeeze %174 : memref<1x!tpu.dma_semaphore, #tpu.memory_space<semaphore_mem>> -> memref<!tpu.dma_semaphore, #tpu.memory_space<semaphore_mem>>
      tpu.enqueue_dma source(%171 : memref<128xf32, #tpu.memory_space<any>>) target(%173 : memref<128xf32, #tpu.memory_space<vmem>>) target_semaphore(%175 : memref<!tpu.dma_semaphore, #tpu.memory_space<semaphore_mem>>)
      %c2_i32_82 = arith.constant 2 : i32
      %176 = arith.addi %155, %c2_i32_82 : i32
      %177 = arith.addi %0, %176 : i32
      %178 = arith.index_cast %177 : i32 to index
      %179 = memref.load %arg1[%178] : memref<16xi32, #tpu.memory_space<smem>>
      %c0_i32_83 = arith.constant 0 : i32
      %180 = tpu.memref_slice %arg4[%179, %c0_i32_83] : memref<64x128xf32, #tpu.memory_space<any>> -> memref<1x128xf32, #tpu.memory_space<any>>
      %181 = tpu.memref_squeeze %180 : memref<1x128xf32, #tpu.memory_space<any>> -> memref<128xf32, #tpu.memory_space<any>>
      %c0_i32_84 = arith.constant 0 : i32
      %182 = tpu.memref_slice %arg10[%176, %c0_i32_84] : memref<8x128xf32, #tpu.memory_space<vmem>> -> memref<1x128xf32, #tpu.memory_space<vmem>>
      %183 = tpu.memref_squeeze %182 : memref<1x128xf32, #tpu.memory_space<vmem>> -> memref<128xf32, #tpu.memory_space<vmem>>
      %184 = tpu.memref_slice %arg11[%154] : memref<3x!tpu.dma_semaphore, #tpu.memory_space<semaphore_mem>> -> memref<1x!tpu.dma_semaphore, #tpu.memory_space<semaphore_mem>>
      %185 = tpu.memref_squeeze %184 : memref<1x!tpu.dma_semaphore, #tpu.memory_space<semaphore_mem>> -> memref<!tpu.dma_semaphore, #tpu.memory_space<semaphore_mem>>
      tpu.enqueue_dma source(%181 : memref<128xf32, #tpu.memory_space<any>>) target(%183 : memref<128xf32, #tpu.memory_space<vmem>>) target_semaphore(%185 : memref<!tpu.dma_semaphore, #tpu.memory_space<semaphore_mem>>)
      %c3_i32_85 = arith.constant 3 : i32
      %186 = arith.addi %155, %c3_i32_85 : i32
      %187 = arith.addi %0, %186 : i32
      %188 = arith.index_cast %187 : i32 to index
      %189 = memref.load %arg1[%188] : memref<16xi32, #tpu.memory_space<smem>>
      %c0_i32_86 = arith.constant 0 : i32
      %190 = tpu.memref_slice %arg4[%189, %c0_i32_86] : memref<64x128xf32, #tpu.memory_space<any>> -> memref<1x128xf32, #tpu.memory_space<any>>
      %191 = tpu.memref_squeeze %190 : memref<1x128xf32, #tpu.memory_space<any>> -> memref<128xf32, #tpu.memory_space<any>>
      %c0_i32_87 = arith.constant 0 : i32
      %192 = tpu.memref_slice %arg10[%186, %c0_i32_87] : memref<8x128xf32, #tpu.memory_space<vmem>> -> memref<1x128xf32, #tpu.memory_space<vmem>>
      %193 = tpu.memref_squeeze %192 : memref<1x128xf32, #tpu.memory_space<vmem>> -> memref<128xf32, #tpu.memory_space<vmem>>
      %194 = tpu.memref_slice %arg11[%154] : memref<3x!tpu.dma_semaphore, #tpu.memory_space<semaphore_mem>> -> memref<1x!tpu.dma_semaphore, #tpu.memory_space<semaphore_mem>>
      %195 = tpu.memref_squeeze %194 : memref<1x!tpu.dma_semaphore, #tpu.memory_space<semaphore_mem>> -> memref<!tpu.dma_semaphore, #tpu.memory_space<semaphore_mem>>
      tpu.enqueue_dma source(%191 : memref<128xf32, #tpu.memory_space<any>>) target(%193 : memref<128xf32, #tpu.memory_space<vmem>>) target_semaphore(%195 : memref<!tpu.dma_semaphore, #tpu.memory_space<semaphore_mem>>)
      %c4_i32_88 = arith.constant 4 : i32
      %196 = arith.addi %155, %c4_i32_88 : i32
      %197 = arith.addi %0, %196 : i32
      %198 = arith.index_cast %197 : i32 to index
      %199 = memref.load %arg1[%198] : memref<16xi32, #tpu.memory_space<smem>>
      %c0_i32_89 = arith.constant 0 : i32
      %200 = tpu.memref_slice %arg4[%199, %c0_i32_89] : memref<64x128xf32, #tpu.memory_space<any>> -> memref<1x128xf32, #tpu.memory_space<any>>
      %201 = tpu.memref_squeeze %200 : memref<1x128xf32, #tpu.memory_space<any>> -> memref<128xf32, #tpu.memory_space<any>>
      %c0_i32_90 = arith.constant 0 : i32
      %202 = tpu.memref_slice %arg10[%196, %c0_i32_90] : memref<8x128xf32, #tpu.memory_space<vmem>> -> memref<1x128xf32, #tpu.memory_space<vmem>>
      %203 = tpu.memref_squeeze %202 : memref<1x128xf32, #tpu.memory_space<vmem>> -> memref<128xf32, #tpu.memory_space<vmem>>
      %204 = tpu.memref_slice %arg11[%154] : memref<3x!tpu.dma_semaphore, #tpu.memory_space<semaphore_mem>> -> memref<1x!tpu.dma_semaphore, #tpu.memory_space<semaphore_mem>>
      %205 = tpu.memref_squeeze %204 : memref<1x!tpu.dma_semaphore, #tpu.memory_space<semaphore_mem>> -> memref<!tpu.dma_semaphore, #tpu.memory_space<semaphore_mem>>
      tpu.enqueue_dma source(%201 : memref<128xf32, #tpu.memory_space<any>>) target(%203 : memref<128xf32, #tpu.memory_space<vmem>>) target_semaphore(%205 : memref<!tpu.dma_semaphore, #tpu.memory_space<semaphore_mem>>)
      %c5_i32_91 = arith.constant 5 : i32
      %206 = arith.addi %155, %c5_i32_91 : i32
      %207 = arith.addi %0, %206 : i32
      %208 = arith.index_cast %207 : i32 to index
      %209 = memref.load %arg1[%208] : memref<16xi32, #tpu.memory_space<smem>>
      %c0_i32_92 = arith.constant 0 : i32
      %210 = tpu.memref_slice %arg4[%209, %c0_i32_92] : memref<64x128xf32, #tpu.memory_space<any>> -> memref<1x128xf32, #tpu.memory_space<any>>
      %211 = tpu.memref_squeeze %210 : memref<1x128xf32, #tpu.memory_space<any>> -> memref<128xf32, #tpu.memory_space<any>>
      %c0_i32_93 = arith.constant 0 : i32
      %212 = tpu.memref_slice %arg10[%206, %c0_i32_93] : memref<8x128xf32, #tpu.memory_space<vmem>> -> memref<1x128xf32, #tpu.memory_space<vmem>>
      %213 = tpu.memref_squeeze %212 : memref<1x128xf32, #tpu.memory_space<vmem>> -> memref<128xf32, #tpu.memory_space<vmem>>
      %214 = tpu.memref_slice %arg11[%154] : memref<3x!tpu.dma_semaphore, #tpu.memory_space<semaphore_mem>> -> memref<1x!tpu.dma_semaphore, #tpu.memory_space<semaphore_mem>>
      %215 = tpu.memref_squeeze %214 : memref<1x!tpu.dma_semaphore, #tpu.memory_space<semaphore_mem>> -> memref<!tpu.dma_semaphore, #tpu.memory_space<semaphore_mem>>
      tpu.enqueue_dma source(%211 : memref<128xf32, #tpu.memory_space<any>>) target(%213 : memref<128xf32, #tpu.memory_space<vmem>>) target_semaphore(%215 : memref<!tpu.dma_semaphore, #tpu.memory_space<semaphore_mem>>)
      %c6_i32_94 = arith.constant 6 : i32
      %216 = arith.addi %155, %c6_i32_94 : i32
      %217 = arith.addi %0, %216 : i32
      %218 = arith.index_cast %217 : i32 to index
      %219 = memref.load %arg1[%218] : memref<16xi32, #tpu.memory_space<smem>>
      %c0_i32_95 = arith.constant 0 : i32
      %220 = tpu.memref_slice %arg4[%219, %c0_i32_95] : memref<64x128xf32, #tpu.memory_space<any>> -> memref<1x128xf32, #tpu.memory_space<any>>
      %221 = tpu.memref_squeeze %220 : memref<1x128xf32, #tpu.memory_space<any>> -> memref<128xf32, #tpu.memory_space<any>>
      %c0_i32_96 = arith.constant 0 : i32
      %222 = tpu.memref_slice %arg10[%216, %c0_i32_96] : memref<8x128xf32, #tpu.memory_space<vmem>> -> memref<1x128xf32, #tpu.memory_space<vmem>>
      %223 = tpu.memref_squeeze %222 : memref<1x128xf32, #tpu.memory_space<vmem>> -> memref<128xf32, #tpu.memory_space<vmem>>
      %224 = tpu.memref_slice %arg11[%154] : memref<3x!tpu.dma_semaphore, #tpu.memory_space<semaphore_mem>> -> memref<1x!tpu.dma_semaphore, #tpu.memory_space<semaphore_mem>>
      %225 = tpu.memref_squeeze %224 : memref<1x!tpu.dma_semaphore, #tpu.memory_space<semaphore_mem>> -> memref<!tpu.dma_semaphore, #tpu.memory_space<semaphore_mem>>
      tpu.enqueue_dma source(%221 : memref<128xf32, #tpu.memory_space<any>>) target(%223 : memref<128xf32, #tpu.memory_space<vmem>>) target_semaphore(%225 : memref<!tpu.dma_semaphore, #tpu.memory_space<semaphore_mem>>)
      %c7_i32_97 = arith.constant 7 : i32
      %226 = arith.addi %155, %c7_i32_97 : i32
      %227 = arith.addi %0, %226 : i32
      %228 = arith.index_cast %227 : i32 to index
      %229 = memref.load %arg1[%228] : memref<16xi32, #tpu.memory_space<smem>>
      %c0_i32_98 = arith.constant 0 : i32
      %230 = tpu.memref_slice %arg4[%229, %c0_i32_98] : memref<64x128xf32, #tpu.memory_space<any>> -> memref<1x128xf32, #tpu.memory_space<any>>
      %231 = tpu.memref_squeeze %230 : memref<1x128xf32, #tpu.memory_space<any>> -> memref<128xf32, #tpu.memory_space<any>>
      %c0_i32_99 = arith.constant 0 : i32
      %232 = tpu.memref_slice %arg10[%226, %c0_i32_99] : memref<8x128xf32, #tpu.memory_space<vmem>> -> memref<1x128xf32, #tpu.memory_space<vmem>>
      %233 = tpu.memref_squeeze %232 : memref<1x128xf32, #tpu.memory_space<vmem>> -> memref<128xf32, #tpu.memory_space<vmem>>
      %234 = tpu.memref_slice %arg11[%154] : memref<3x!tpu.dma_semaphore, #tpu.memory_space<semaphore_mem>> -> memref<1x!tpu.dma_semaphore, #tpu.memory_space<semaphore_mem>>
      %235 = tpu.memref_squeeze %234 : memref<1x!tpu.dma_semaphore, #tpu.memory_space<semaphore_mem>> -> memref<!tpu.dma_semaphore, #tpu.memory_space<semaphore_mem>>
      tpu.enqueue_dma source(%231 : memref<128xf32, #tpu.memory_space<any>>) target(%233 : memref<128xf32, #tpu.memory_space<vmem>>) target_semaphore(%235 : memref<!tpu.dma_semaphore, #tpu.memory_space<semaphore_mem>>)
    } else {
    }
    %c3_i32_41 = arith.constant 3 : i32
    %c0_i32_42 = arith.constant 0 : i32
    %81 = arith.cmpi eq, %c3_i32_41, %c0_i32_42 : i32
    %c1_i32_43 = arith.constant 1 : i32
    %82 = arith.select %81, %c1_i32_43, %c3_i32_41 : i32
    %83 = arith.remsi %76, %82 : i32
    %c0_i32_44 = arith.constant 0 : i32
    %84 = arith.cmpi ne, %83, %c0_i32_44 : i32
    %c0_i32_45 = arith.constant 0 : i32
    %85 = arith.cmpi slt, %83, %c0_i32_45 : i32
    %c0_i32_46 = arith.constant 0 : i32
    %86 = arith.cmpi slt, %82, %c0_i32_46 : i32
    %87 = arith.xori %85, %86 : i1
    %88 = arith.andi %87, %84 : i1
    %89 = arith.addi %83, %82 : i32
    %90 = arith.select %88, %89, %83 : i32
    %c8_i32_47 = arith.constant 8 : i32
    %91 = arith.muli %76, %c8_i32_47 : i32
    %92 = tpu.assume_multiple %91, 8 : i32
    %c0_i32_48 = arith.constant 0 : i32
    %c0_i32_49 = arith.constant 0 : i32
    %93 = tpu.memref_slice %arg4[%c0_i32_48, %c0_i32_49] : memref<64x128xf32, #tpu.memory_space<any>> -> memref<8x128xf32, #tpu.memory_space<any>>
    %c0_i32_50 = arith.constant 0 : i32
    %94 = tpu.memref_slice %arg10[%92, %c0_i32_50] : memref<8x128xf32, #tpu.memory_space<vmem>> -> memref<8x128xf32, #tpu.memory_space<vmem>>
    %95 = tpu.memref_slice %arg11[%90] : memref<3x!tpu.dma_semaphore, #tpu.memory_space<semaphore_mem>> -> memref<1x!tpu.dma_semaphore, #tpu.memory_space<semaphore_mem>>
    %96 = tpu.memref_squeeze %95 : memref<1x!tpu.dma_semaphore, #tpu.memory_space<semaphore_mem>> -> memref<!tpu.dma_semaphore, #tpu.memory_space<semaphore_mem>>
    tpu.wait_dma2 semaphore(%96 : memref<!tpu.dma_semaphore, #tpu.memory_space<semaphore_mem>>) src(%93 : memref<8x128xf32, #tpu.memory_space<any>>) dst(%94 : memref<8x128xf32, #tpu.memory_space<vmem>>)
    %c8_i32_51 = arith.constant 8 : i32
    %97 = arith.muli %76, %c8_i32_51 : i32
    %98 = tpu.assume_multiple %97, 8 : i32
    %99 = arith.index_cast %98 : i32 to index
    %c0_52 = arith.constant 0 : index
    %100 = vector.load %arg10[%99, %c0_52] : memref<8x128xf32, #tpu.memory_space<vmem>>, vector<8x128xf32>
    %101 = arith.index_cast %98 : i32 to index
    %c0_53 = arith.constant 0 : index
    %102 = vector.load %arg2[%101, %c0_53] : memref<8x1xi32, #tpu.memory_space<vmem>>, vector<8x1xi32>
    %103 = arith.index_cast %98 : i32 to index
    %c0_54 = arith.constant 0 : index
    %104 = vector.load %arg3[%103, %c0_54] : memref<8x1xi32, #tpu.memory_space<vmem>>, vector<8x1xi32>
    %105 = tpu.iota {dimensions = array<i32: 1>} : vector<8x2xi32>
    %106 = vector.broadcast %102 : vector<8x1xi32> to vector<8x2xi32>
    %107 = arith.cmpi eq, %106, %105 : vector<8x2xi32>
    %108 = arith.extui %107 : vector<8x2xi1> to vector<8x2xi32>
    %109 = arith.sitofp %108 : vector<8x2xi32> to vector<8x2xf32>
    %110 = tpu.iota {dimensions = array<i32: 1>} : vector<8x32xi32>
    %111 = vector.broadcast %104 : vector<8x1xi32> to vector<8x32xi32>
    %112 = arith.cmpi eq, %111, %110 : vector<8x32xi32>
    %113 = arith.extui %112 : vector<8x32xi1> to vector<8x32xi32>
    %114 = arith.sitofp %113 : vector<8x32xi32> to vector<8x32xf32>
    %c0_55 = arith.constant 0 : index
    %c0_56 = arith.constant 0 : index
    %115 = vector.load %arg5[%c0_55, %c0_56] : memref<2x128xf32, #tpu.memory_space<vmem>>, vector<2x128xf32>
    %cst = arith.constant dense<0.000000e+00> : vector<8x128xf32>
    %116 = tpu.matmul %109, %115, %cst {dimension_numbers = #tpu.dot_dimension_numbers<[1], [0], [0], [1], [0, 0, 1, 1], [], []>} : vector<8x2xf32>, vector<2x128xf32>, vector<8x128xf32> -> vector<8x128xf32>
    %117 = arith.addf %100, %116 : vector<8x128xf32>
    %c0_57 = arith.constant 0 : index
    %c0_58 = arith.constant 0 : index
    %118 = vector.load %arg6[%c0_57, %c0_58] : memref<32x128xf32, #tpu.memory_space<vmem>>, vector<32x128xf32>
    %cst_59 = arith.constant dense<0.000000e+00> : vector<8x128xf32>
    %119 = tpu.matmul %114, %118, %cst_59 {dimension_numbers = #tpu.dot_dimension_numbers<[1], [0], [0], [1], [0, 0, 1, 1], [], []>} : vector<8x32xf32>, vector<32x128xf32>, vector<8x128xf32> -> vector<8x128xf32>
    %120 = arith.addf %117, %119 : vector<8x128xf32>
    %cst_60 = arith.constant dense<0.000000e+00> : vector<8xf32>
    %121 = vector.multi_reduction <add>, %120, %cst_60 [1] : vector<8x128xf32> to vector<8xf32>
    %122 = vector.shape_cast %121 : vector<8xf32> to vector<8x1xf32>
    %cst_61 = arith.constant 1.280000e+02 : f32
    %123 = vector.broadcast %cst_61 : f32 to vector<8x1xf32>
    %124 = arith.divf %122, %123 : vector<8x1xf32>
    %125 = vector.broadcast %124 : vector<8x1xf32> to vector<8x128xf32>
    %126 = arith.subf %120, %125 : vector<8x128xf32>
    %127 = arith.mulf %126, %126 : vector<8x128xf32>
    %cst_62 = arith.constant dense<0.000000e+00> : vector<8xf32>
    %128 = vector.multi_reduction <add>, %127, %cst_62 [1] : vector<8x128xf32> to vector<8xf32>
    %129 = vector.shape_cast %128 : vector<8xf32> to vector<8x1xf32>
    %cst_63 = arith.constant 1.280000e+02 : f32
    %130 = vector.broadcast %cst_63 : f32 to vector<8x1xf32>
    %131 = arith.divf %129, %130 : vector<8x1xf32>
    %cst_64 = arith.constant 9.99999996E-13 : f32
    %132 = vector.broadcast %cst_64 : f32 to vector<8x1xf32>
    %133 = arith.addf %131, %132 : vector<8x1xf32>
    %134 = math.rsqrt %133 : vector<8x1xf32>
    %135 = vector.broadcast %134 : vector<8x1xf32> to vector<8x128xf32>
    %136 = arith.mulf %126, %135 : vector<8x128xf32>
    %137 = vector.broadcast %1 : vector<1x128xf32> to vector<8x128xf32>
    %138 = arith.mulf %136, %137 : vector<8x128xf32>
    %139 = vector.broadcast %2 : vector<1x128xf32> to vector<8x128xf32>
    %140 = arith.addf %138, %139 : vector<8x128xf32>
    %141 = arith.index_cast %98 : i32 to index
    %c0_65 = arith.constant 0 : index
    %142 = vector.load %arg9[%141, %c0_65] : memref<8x128xf32, #tpu.memory_space<vmem>>, vector<8x128xf32>
    tpu.vector_store %arg9[%141, %c0_65], %140 {strides = array<i32>} : memref<8x128xf32, #tpu.memory_space<vmem>>, vector<8x128xf32>,
    %c1_i32_66 = arith.constant 1 : i32
    return
  }
  func.func @transform_0(%arg0: i32, %arg1: memref<16xi32, #tpu.memory_space<smem>>) -> (i32, i32) {
    %c0_i32 = arith.constant 0 : i32
    %c0_i32_0 = arith.constant 0 : i32
    return %arg0, %c0_i32 : i32, i32
  }
  func.func @transform_1(%arg0: i32, %arg1: memref<16xi32, #tpu.memory_space<smem>>) -> (i32, i32) {
    %c0_i32 = arith.constant 0 : i32
    %c0_i32_0 = arith.constant 0 : i32
    return %arg0, %c0_i32 : i32, i32
  }
  func.func @transform_3(%arg0: i32, %arg1: memref<16xi32, #tpu.memory_space<smem>>) -> (i32, i32) {
    %c0_i32 = arith.constant 0 : i32
    %c0_i32_0 = arith.constant 0 : i32
    %c0_i32_1 = arith.constant 0 : i32
    return %c0_i32, %c0_i32_0 : i32, i32
  }
  func.func @transform_4(%arg0: i32, %arg1: memref<16xi32, #tpu.memory_space<smem>>) -> (i32, i32) {
    %c0_i32 = arith.constant 0 : i32
    %c0_i32_0 = arith.constant 0 : i32
    %c0_i32_1 = arith.constant 0 : i32
    return %c0_i32, %c0_i32_0 : i32, i32
  }
  func.func @transform_5(%arg0: i32, %arg1: memref<16xi32, #tpu.memory_space<smem>>) -> (i32, i32) {
    %c0_i32 = arith.constant 0 : i32
    %c0_i32_0 = arith.constant 0 : i32
    %c0_i32_1 = arith.constant 0 : i32
    return %c0_i32, %c0_i32_0 : i32, i32
  }
  func.func @transform_6(%arg0: i32, %arg1: memref<16xi32, #tpu.memory_space<smem>>) -> (i32, i32) {
    %c0_i32 = arith.constant 0 : i32
    %c0_i32_0 = arith.constant 0 : i32
    %c0_i32_1 = arith.constant 0 : i32
    return %c0_i32, %c0_i32_0 : i32, i32
  }
  func.func @transform_7(%arg0: i32, %arg1: memref<16xi32, #tpu.memory_space<smem>>) -> (i32, i32) {
    %c0_i32 = arith.constant 0 : i32
    %c0_i32_0 = arith.constant 0 : i32
    return %arg0, %c0_i32 : i32, i32
  }
}

</mosaic_0001>

<llo_original>
// kernel: tpu_custom_call.1
$region0: #{tpu_custom_call.1}
  #allocation0 [shape = 'u32[]', space=smem, size = 0x4, offset = 0x4, fixed_abs, tag = 'smem constant byte address 0x4 - core index']
  #allocation1 [shape = 'u32[72,128]{1,0:T(1,128)}', space=vmem, size = 0x9000, scoped, tag = 'internal scratch']
  #allocation2 [shape = 'f32[8,128]{1,0:T(8,128)}', space=vmem, size = 0x1000, scoped, tag = 'scratch operand']
  #allocation3 [shape = 's32[3]{0}', space=sflag, size = 0xc, scoped, tag = 'scratch operand']
  #allocation4 [shape = 's32[1]{0}', space=sflag, size = 0x4, scoped, tag = 'scoped memory for tpu_custom_call.1']
  #allocation5 [shape = 'u8[512]{0}', space=smem, size = 0x200, scoped, tag = 'prefetched SMEM operand 0']
  #allocation8 [shape = 's32[]', space=sflag, size = 0x4, offset = 0, fixed_abs, tag = 'sflag constant byte address 0x0 - dummy sync flag']
  #allocation9 [shape = 's32[]', space=sflag, size = 0x4, offset = 0, fixed_abs, tag = 'sflag constant byte address 0x0 - dummy sync flag']
  #allocation10 [shape = 'u32[]', space=smem, size = 0x4, offset = 0x44, fixed_abs, tag = 'smem constant byte address 0x44 - assertion arg 0']
  #allocation11 [shape = 'u32[]', space=smem, size = 0x4, offset = 0x48, fixed_abs, tag = 'smem constant byte address 0x48 - assertion arg 1']
  #allocation12 [shape = 's32[]', space=sflag, size = 0x4, offset = 0, fixed_abs, tag = 'sflag constant byte address 0x0 - dummy sync flag']
  #allocation13 [shape = 's32[]', space=sflag, size = 0x4, offset = 0, fixed_abs, tag = 'sflag constant byte address 0x0 - dummy sync flag']
  #allocation14 [shape = 's32[]', space=sflag, size = 0x4, offset = 0, fixed_abs, tag = 'sflag constant byte address 0x0 - dummy sync flag']
  #allocation15 [shape = 's32[]', space=sflag, size = 0x4, offset = 0, fixed_abs, tag = 'sflag constant byte address 0x0 - dummy sync flag']
  #allocation16 [shape = 's32[]', space=sflag, size = 0x4, offset = 0, fixed_abs, tag = 'sflag constant byte address 0x0 - dummy sync flag']
  #allocation17 [shape = 's32[]', space=sflag, size = 0x4, offset = 0, fixed_abs, tag = 'sflag constant byte address 0x0 - dummy sync flag']
  #allocation18 [shape = 's32[]', space=sflag, size = 0x4, offset = 0, fixed_abs, tag = 'sflag constant byte address 0x0 - dummy sync flag']
  #allocation19 [shape = 's32[]', space=sflag, size = 0x4, offset = 0, fixed_abs, tag = 'sflag constant byte address 0x0 - dummy sync flag']
  #allocation20 [shape = 's32[]', space=sflag, size = 0x4, offset = 0, fixed_abs, tag = 'sflag constant byte address 0x0 - dummy sync flag']
  #allocation21 [shape = 's32[]', space=sflag, size = 0x4, offset = 0, fixed_abs, tag = 'sflag constant byte address 0x0 - dummy sync flag']
  #allocation22 [shape = 's32[]', space=sflag, size = 0x4, offset = 0, fixed_abs, tag = 'sflag constant byte address 0x0 - dummy sync flag']
  #allocation23 [shape = 's32[]', space=sflag, size = 0x4, offset = 0, fixed_abs, tag = 'sflag constant byte address 0x0 - dummy sync flag']
  #allocation24 [shape = 's32[]', space=sflag, size = 0x4, offset = 0, fixed_abs, tag = 'sflag constant byte address 0x0 - dummy sync flag']
  #allocation25 [shape = 's32[]', space=sflag, size = 0x4, offset = 0, fixed_abs, tag = 'sflag constant byte address 0x0 - dummy sync flag']
  %s0 = inlined_call_operand.vmem [shape: s32[16], index: 0, kind: input, shape index: {}]
  %s1 = inlined_call_operand.vmem [shape: s32[16,1], index: 1, kind: input, shape index: {}]
  %s2 = inlined_call_operand.vmem [shape: s32[16,1], index: 2, kind: input, shape index: {}]
  %s3 = inlined_call_operand.hbm [shape: f32[64,128], index: 3, kind: input, shape index: {}]
  %s4 = inlined_call_operand.vmem [shape: f32[2,128], index: 4, kind: input, shape index: {}]
  %s5 = inlined_call_operand.vmem [shape: f32[32,128], index: 5, kind: input, shape index: {}]
  %s6 = inlined_call_operand.vmem [shape: f32[1,128], index: 6, kind: input, shape index: {}]
  %s7 = inlined_call_operand.vmem [shape: f32[1,128], index: 7, kind: input, shape index: {}]
  %s8 = inlined_call_operand.hbm [shape: f32[16,128], index: 8, kind: output, shape index: {}]
  %s9 = sld [smem:[#allocation0]]
  $region89: #{tpu_custom_call.1} parent=0
    _
  %s11 = ssub.s32 1, %s9
  %s12 = scalar_select 0, %s11, %s9
  %s14 = sshll.u32 %s0, 4
  %s15 = int_to_ptr.vmem [resolvable:$true] %s14
  %17 = dma.vmem_to_smem %s15, 16, [#allocation5], [#allocation4]
  %19 = dma.done [#allocation4], 16
  %20 = sfence
  $region1: #{tpu_custom_call.1} parent=0
    #allocation6 [shape = 'u8[8192]{0}', space=vmem, size = 0x2000, scoped, tag = 'output window, operand 0']
    #allocation7 [shape = 's32[2]{0}', space=sflag, size = 0x8, scoped, tag = 'scoped memory for tpu_custom_call.1']
    %21 = vsyncpa [#allocation7], 0
    %s22 = scalar_lea.sflag [#allocation7], 1
    %23 = vsyncpa %s22, 0
    loop: start=0, step=1, limit=4
    $region2: #{tpu_custom_call.1} parent=1 // loop_pre_header
      _
    $region3: #{tpu_custom_call.1} parent=1 // loop_header
      %s25 = sphi 0, %s29
      %p26 = scmp.ge.s32.totalorder %s25, 4
      %s35 = sphi 0, %s37
      %s38 = sphi 0, %s35
      %s39 = sphi 0, %s38
      %s55 = sphi 0, %s39
      %s61 = sphi 0, %s63
      %s64 = sphi 0, %s61
      %s65 = sphi 0, %s64
      %s81 = sphi 0, %s65
      %s85 = sphi 0, %s85
      %s87 = sphi 0, %s85
      %s88 = sphi 0, %s87
      %s102 = sphi 0, %s88
      %s106 = sphi 0, %s106
      %s108 = sphi 0, %s106
      %s109 = sphi 0, %s108
      %s123 = sphi 0, %s109
      %s127 = sphi 0, %s127
      %s129 = sphi 0, %s127
      %s130 = sphi 0, %s129
      %s144 = sphi 0, %s130
      %s148 = sphi 0, %s148
      %s150 = sphi 0, %s148
      %s151 = sphi 0, %s150
      %s165 = sphi 0, %s151
      %s171 = sphi 0, %s173
      %s174 = sphi 0, %s171
      %s175 = sphi 0, %s174
      %s191 = sphi 0, %s175
    $region4: #{tpu_custom_call.1} parent=1 // loop_header_branch
      %28 = sbr.rel (%p26) target = $region8
    $region5: #{tpu_custom_call.1} parent=1 // loop_body
      %s30 = ssub.s32 %s25, 1
      %s31 = ssub.s32 %s25, 2
      %s32 = sadd.s32 %s25, 1
      %s33 = ssub.s32 %s25, %s32
      %p34 = scmp.eq.s32.totalorder %s33, 0
      %s36 = sadd.s32 %s35, 1
      %s37 = scalar_select %p34, %s35, %s36
      %p40 = pneg %p34
      %p41 = scmp.eq.s32.totalorder %s25, 1
      %p42 = por %p40, %p41
      %p43 = scmp.ne.s32.totalorder %s35, %s38
      %p44 = scmp.eq.s32.totalorder %s25, 0
      %p45 = por %p43, %p44
      %p46 = scmp.ne.s32.totalorder %s35, %s38
      %p47 = scmp.eq.s32.totalorder %s30, 1
      %p48 = por %p46, %p47
      %p49 = scmp.ne.s32.totalorder %s38, %s39
      %p50 = scmp.eq.s32.totalorder %s30, 0
      %p51 = por %p49, %p50
      %p52 = scmp.ne.s32.totalorder %s38, %s39
      %p53 = scmp.eq.s32.totalorder %s31, 1
      %p54 = por %p52, %p53
      %p56 = scmp.ne.s32.totalorder %s39, %s55
      %p57 = scmp.eq.s32.totalorder %s31, 0
      %p58 = por %p56, %p57
      %s59 = ssub.s32 %s25, %s32
      %p60 = scmp.eq.s32.totalorder %s59, 0
      %s62 = sadd.s32 %s61, 1
      %s63 = scalar_select %p60, %s61, %s62
      %p66 = pneg %p60
      %p67 = scmp.eq.s32.totalorder %s25, 1
      %p68 = por %p66, %p67
      %p69 = scmp.ne.s32.totalorder %s61, %s64
      %p70 = scmp.eq.s32.totalorder %s25, 0
      %p71 = por %p69, %p70
      %p72 = scmp.ne.s32.totalorder %s61, %s64
      %p73 = scmp.eq.s32.totalorder %s30, 1
      %p74 = por %p72, %p73
      %p75 = scmp.ne.s32.totalorder %s64, %s65
      %p76 = scmp.eq.s32.totalorder %s30, 0
      %p77 = por %p75, %p76
      %p78 = scmp.ne.s32.totalorder %s64, %s65
      %p79 = scmp.eq.s32.totalorder %s31, 1
      %p80 = por %p78, %p79
      %p82 = scmp.ne.s32.totalorder %s65, %s81
      %p83 = scmp.eq.s32.totalorder %s31, 0
      %p84 = por %p82, %p83
      %s86 = sadd.s32 %s85, 1
      %p89 = scmp.eq.s32.totalorder %s25, 1
      %p90 = scmp.ne.s32.totalorder %s85, %s87
      %p91 = scmp.eq.s32.totalorder %s25, 0
      %p92 = por %p90, %p91
      %p93 = scmp.ne.s32.totalorder %s85, %s87
      %p94 = scmp.eq.s32.totalorder %s30, 1
      %p95 = por %p93, %p94
      %p96 = scmp.ne.s32.totalorder %s87, %s88
      %p97 = scmp.eq.s32.totalorder %s30, 0
      %p98 = por %p96, %p97
      %p99 = scmp.ne.s32.totalorder %s87, %s88
      %p100 = scmp.eq.s32.totalorder %s31, 1
      %p101 = por %p99, %p100
      %p103 = scmp.ne.s32.totalorder %s88, %s102
      %p104 = scmp.eq.s32.totalorder %s31, 0
      %p105 = por %p103, %p104
      %s107 = sadd.s32 %s106, 1
      %p110 = scmp.eq.s32.totalorder %s25, 1
      %p111 = scmp.ne.s32.totalorder %s106, %s108
      %p112 = scmp.eq.s32.totalorder %s25, 0
      %p113 = por %p111, %p112
      %p114 = scmp.ne.s32.totalorder %s106, %s108
      %p115 = scmp.eq.s32.totalorder %s30, 1
      %p116 = por %p114, %p115
      %p117 = scmp.ne.s32.totalorder %s108, %s109
      %p118 = scmp.eq.s32.totalorder %s30, 0
      %p119 = por %p117, %p118
      %p120 = scmp.ne.s32.totalorder %s108, %s109
      %p121 = scmp.eq.s32.totalorder %s31, 1
      %p122 = por %p120, %p121
      %p124 = scmp.ne.s32.totalorder %s109, %s123
      %p125 = scmp.eq.s32.totalorder %s31, 0
      %p126 = por %p124, %p125
      %s128 = sadd.s32 %s127, 1
      %p131 = scmp.eq.s32.totalorder %s25, 1
      %p132 = scmp.ne.s32.totalorder %s127, %s129
      %p133 = scmp.eq.s32.totalorder %s25, 0
      %p134 = por %p132, %p133
      %p135 = scmp.ne.s32.totalorder %s127, %s129
      %p136 = scmp.eq.s32.totalorder %s30, 1
      %p137 = por %p135, %p136
      %p138 = scmp.ne.s32.totalorder %s129, %s130
      %p139 = scmp.eq.s32.totalorder %s30, 0
      %p140 = por %p138, %p139
      %p141 = scmp.ne.s32.totalorder %s129, %s130
      %p142 = scmp.eq.s32.totalorder %s31, 1
      %p143 = por %p141, %p142
      %p145 = scmp.ne.s32.totalorder %s130, %s144
      %p146 = scmp.eq.s32.totalorder %s31, 0
      %p147 = por %p145, %p146
      %s149 = sadd.s32 %s148, 1
      %p152 = scmp.eq.s32.totalorder %s25, 1
      %p153 = scmp.ne.s32.totalorder %s148, %s150
      %p154 = scmp.eq.s32.totalorder %s25, 0
      %p155 = por %p153, %p154
      %p156 = scmp.ne.s32.totalorder %s148, %s150
      %p157 = scmp.eq.s32.totalorder %s30, 1
      %p158 = por %p156, %p157
      %p159 = scmp.ne.s32.totalorder %s150, %s151
      %p160 = scmp.eq.s32.totalorder %s30, 0
      %p161 = por %p159, %p160
      %p162 = scmp.ne.s32.totalorder %s150, %s151
      %p163 = scmp.eq.s32.totalorder %s31, 1
      %p164 = por %p162, %p163
      %p166 = scmp.ne.s32.totalorder %s151, %s165
      %p167 = scmp.eq.s32.totalorder %s31, 0
      %p168 = por %p166, %p167
      %s169 = ssub.s32 %s25, %s32
      %p170 = scmp.eq.s32.totalorder %s169, 0
      %s172 = sadd.s32 %s171, 1
      %s173 = scalar_select %p170, %s171, %s172
      %p176 = pneg %p170
      %p177 = scmp.eq.s32.totalorder %s25, 1
      %p178 = por %p176, %p177
      %p179 = scmp.ne.s32.totalorder %s171, %s174
      %p180 = scmp.eq.s32.totalorder %s25, 0
      %p181 = por %p179, %p180
      %p182 = scmp.ne.s32.totalorder %s171, %s174
      %p183 = scmp.eq.s32.totalorder %s30, 1
      %p184 = por %p182, %p183
      %p185 = scmp.ne.s32.totalorder %s174, %s175
      %p186 = scmp.eq.s32.totalorder %s30, 0
      %p187 = por %p185, %p186
      %p188 = scmp.ne.s32.totalorder %s174, %s175
      %p189 = scmp.eq.s32.totalorder %s31, 1
      %p190 = por %p188, %p189
      %p192 = scmp.ne.s32.totalorder %s175, %s191
      %p193 = scmp.eq.s32.totalorder %s31, 0
      %p194 = por %p192, %p193
      %p195 = scmp.le.s32.totalorder 1, %s25
      %p196 = scmp.lt.s32.totalorder %s25, 3
      %p197 = pnand %p195, %p196
      %p198 = pneg %p197
      // Predicated region
      $region9: #{tpu_custom_call.1} parent=5 // pred_check
        _
      $region10: #{tpu_custom_call.1} parent=5 // pred_check_branch
        %200 = sbr.rel (%p197) target = $region12
      $region11: #{tpu_custom_call.1} parent=5 // pred_region
        %s201 = ssub.s32 %s25, 1
        // Predicated region
        $region13: #{tpu_custom_call.1} parent=11 // pred_check
          %p202 = pneg %p98
        $region14: #{tpu_custom_call.1} parent=11 // pred_check_branch
          %204 = sbr.rel (%p202) target = $region16
        $region15: #{tpu_custom_call.1} parent=11 // pred_region
          _
        $region16: #{tpu_custom_call.1} parent=11 // pred_fallthru
          _
        // Predicated region
        $region17: #{tpu_custom_call.1} parent=11 // pred_check
          %p205 = pneg %p119
        $region18: #{tpu_custom_call.1} parent=11 // pred_check_branch
          %207 = sbr.rel (%p205) target = $region20
        $region19: #{tpu_custom_call.1} parent=11 // pred_region
          _
        $region20: #{tpu_custom_call.1} parent=11 // pred_fallthru
          _
        // Predicated region
        $region21: #{tpu_custom_call.1} parent=11 // pred_check
          %p208 = pneg %p140
        $region22: #{tpu_custom_call.1} parent=11 // pred_check_branch
          %210 = sbr.rel (%p208) target = $region24
        $region23: #{tpu_custom_call.1} parent=11 // pred_region
          _
        $region24: #{tpu_custom_call.1} parent=11 // pred_fallthru
          _
        // Predicated region
        $region25: #{tpu_custom_call.1} parent=11 // pred_check
          %p211 = pneg %p161
        $region26: #{tpu_custom_call.1} parent=11 // pred_check_branch
          %213 = sbr.rel (%p211) target = $region28
        $region27: #{tpu_custom_call.1} parent=11 // pred_region
          _
        $region28: #{tpu_custom_call.1} parent=11 // pred_fallthru
          _
      $region12: #{tpu_custom_call.1} parent=5 // pred_fallthru
        _
      %p214 = scmp.lt.s32.totalorder %s25, 2
      // Predicated region
      $region29: #{tpu_custom_call.1} parent=5 // pred_check
        %p215 = pneg %p214
      $region30: #{tpu_custom_call.1} parent=5 // pred_check_branch
        %217 = sbr.rel (%p215) target = $region32
      $region31: #{tpu_custom_call.1} parent=5 // pred_region
        // Predicated region
        $region33: #{tpu_custom_call.1} parent=31 // pred_check
          %p218 = pneg %p45
        $region34: #{tpu_custom_call.1} parent=31 // pred_check_branch
          %220 = sbr.rel (%p218) target = $region36
        $region35: #{tpu_custom_call.1} parent=31 // pred_region
          %p221 = scmp.lt.s32.totalorder %s25, 1
          %s222 = scalar_select %p221, %s25, 1
          %s223 = smul.addr %s222, 8
          %s224 = scalar_lea.vmem %s1, %s223
        $region36: #{tpu_custom_call.1} parent=31 // pred_fallthru
          _
        // Predicated region
        $region37: #{tpu_custom_call.1} parent=31 // pred_check
          %p225 = pneg %p71
        $region38: #{tpu_custom_call.1} parent=31 // pred_check_branch
          %227 = sbr.rel (%p225) target = $region40
        $region39: #{tpu_custom_call.1} parent=31 // pred_region
          %p228 = scmp.lt.s32.totalorder %s25, 1
          %s229 = scalar_select %p228, %s25, 1
          %s230 = smul.addr %s229, 8
          %s231 = scalar_lea.vmem %s2, %s230
        $region40: #{tpu_custom_call.1} parent=31 // pred_fallthru
          _
      $region32: #{tpu_custom_call.1} parent=5 // pred_fallthru
        _
      %p232 = scmp.le.s32.totalorder 1, %s25
      %p233 = scmp.lt.s32.totalorder %s25, 3
      %p234 = pnand %p232, %p233
      %p235 = pneg %p234
      // Predicated region
      $region41: #{tpu_custom_call.1} parent=5 // pred_check
        _
      $region42: #{tpu_custom_call.1} parent=5 // pred_check_branch
        %237 = sbr.rel (%p234) target = $region44
      $region43: #{tpu_custom_call.1} parent=5 // pred_region
        %s238 = ssub.s32 %s25, 1
        %p239 = scmp.lt.s32.totalorder %s30, 1
        %s240 = scalar_select %p239, %s30, 1
        %s241 = smul.addr %s240, 8
        %s242 = scalar_lea.vmem %s1, %s241
        %p243 = pneg %p51
        %p244 = pneg %p48
        %p245 = scmp.lt.s32.totalorder %s30, 1
        %s246 = scalar_select %p245, %s30, 1
        %s247 = smul.addr %s246, 8
        %s248 = scalar_lea.vmem %s2, %s247
        %p249 = pneg %p77
        %p250 = pneg %p74
        %p251 = pneg %p98
        %p252 = pneg %p95
        %p253 = pneg %p119
        %p254 = pneg %p116
        %p255 = pneg %p140
        %p256 = pneg %p137
        %p257 = pneg %p161
        %p258 = pneg %p158
        %p259 = pneg %p187
        %p260 = pneg %p184
        %s261 = sand.u32 %s174, 1
        %s262 = scalar_lea.sflag [#allocation7], %s261
        %s263 = sand.u32 %s174, 1
        %s264 = smul.addr %s263, 8
        %s265 = scalar_lea.vmem [#allocation6], %s264
        %p266 = scmp.lt.s32.totalorder %s30, 1
        %s267 = scalar_select %p266, %s30, 1
        %s268 = smul.addr %s267, 8
        %s269 = scalar_lea.vmem %s1, %s268
        %p270 = scmp.lt.s32.totalorder %s30, 1
        %s271 = scalar_select %p270, %s30, 1
        %s272 = smul.addr %s271, 8
        %s273 = scalar_lea.vmem %s2, %s272
        %s274 = smul.u32 %s30, 8
        %v275 = vld [vmem:[%s6] sm:$0x1]
        %v276 = vld [vmem:[%s7] sm:$0x1]
        %s277 = sld [smem:[#allocation5 + %s274]]
        %s278 = scalar_lea.hbm %s3, %s277
        // Predicated region
        $region45: #{tpu_custom_call.1} parent=43 // pred_check
          _
        $region46: #{tpu_custom_call.1} parent=43 // pred_check_branch
          %280 = sbr.rel target = $region48
        $region47: #{tpu_custom_call.1} parent=43 // pred_region
          %281 = sst [smem:[#allocation10]] [#allocation9]
          %282 = sst [smem:[#allocation11]] [#allocation8]
        $region48: #{tpu_custom_call.1} parent=43 // pred_fallthru
          _
        %284 = shalt.err (0)
        %s286 = sshll.u32 %s278, 4
        %s287 = int_to_ptr.hbm [resolvable:$true] %s286
        %s288 = sshll.u32 [#allocation2], 4
        %s289 = int_to_ptr.vmem [resolvable:$true] %s288
        %291 = dma.hbm_to_vmem [thread:$0]  %s287, 16, %s289, [#allocation3]
        %s292 = sadd.s32 %s274, 1
        %s293 = sld [smem:[#allocation5 + %s292]]
        %s294 = scalar_lea.hbm %s3, %s293
        %s295 = scalar_lea.vmem [#allocation2], 1
        // Predicated region
        $region49: #{tpu_custom_call.1} parent=43 // pred_check
          _
        $region50: #{tpu_custom_call.1} parent=43 // pred_check_branch
          %297 = sbr.rel target = $region52
        $region51: #{tpu_custom_call.1} parent=43 // pred_region
          %298 = sst [smem:[#allocation10]] [#allocation13]
          %299 = sst [smem:[#allocation11]] [#allocation12]
        $region52: #{tpu_custom_call.1} parent=43 // pred_fallthru
          _
        %301 = shalt.err (0)
        %s303 = sshll.u32 %s294, 4
        %s304 = int_to_ptr.hbm [resolvable:$true] %s303
        %s305 = sshll.u32 %s295, 4
        %s306 = int_to_ptr.vmem [resolvable:$true] %s305
        %308 = dma.hbm_to_vmem [thread:$0]  %s304, 16, %s306, [#allocation3]
        %s309 = sadd.s32 %s274, 2
        %s310 = sld [smem:[#allocation5 + %s309]]
        %s311 = scalar_lea.hbm %s3, %s310
        %s312 = scalar_lea.vmem [#allocation2], 2
        // Predicated region
        $region53: #{tpu_custom_call.1} parent=43 // pred_check
          _
        $region54: #{tpu_custom_call.1} parent=43 // pred_check_branch
          %314 = sbr.rel target = $region56
        $region55: #{tpu_custom_call.1} parent=43 // pred_region
          %315 = sst [smem:[#allocation10]] [#allocation15]
          %316 = sst [smem:[#allocation11]] [#allocation14]
        $region56: #{tpu_custom_call.1} parent=43 // pred_fallthru
          _
        %318 = shalt.err (0)
        %s320 = sshll.u32 %s311, 4
        %s321 = int_to_ptr.hbm [resolvable:$true] %s320
        %s322 = sshll.u32 %s312, 4
        %s323 = int_to_ptr.vmem [resolvable:$true] %s322
        %325 = dma.hbm_to_vmem [thread:$0]  %s321, 16, %s323, [#allocation3]
        %s326 = sadd.s32 %s274, 3
        %s327 = sld [smem:[#allocation5 + %s326]]
        %s328 = scalar_lea.hbm %s3, %s327
        %s329 = scalar_lea.vmem [#allocation2], 3
        // Predicated region
        $region57: #{tpu_custom_call.1} parent=43 // pred_check
          _
        $region58: #{tpu_custom_call.1} parent=43 // pred_check_branch
          %331 = sbr.rel target = $region60
        $region59: #{tpu_custom_call.1} parent=43 // pred_region
          %332 = sst [smem:[#allocation10]] [#allocation17]
          %333 = sst [smem:[#allocation11]] [#allocation16]
        $region60: #{tpu_custom_call.1} parent=43 // pred_fallthru
          _
        %335 = shalt.err (0)
        %s337 = sshll.u32 %s328, 4
        %s338 = int_to_ptr.hbm [resolvable:$true] %s337
        %s339 = sshll.u32 %s329, 4
        %s340 = int_to_ptr.vmem [resolvable:$true] %s339
        %342 = dma.hbm_to_vmem [thread:$0]  %s338, 16, %s340, [#allocation3]
        %s343 = sadd.s32 %s274, 4
        %s344 = sld [smem:[#allocation5 + %s343]]
        %s345 = scalar_lea.hbm %s3, %s344
        %s346 = scalar_lea.vmem [#allocation2], 4
        // Predicated region
        $region61: #{tpu_custom_call.1} parent=43 // pred_check
          _
        $region62: #{tpu_custom_call.1} parent=43 // pred_check_branch
          %348 = sbr.rel target = $region64
        $region63: #{tpu_custom_call.1} parent=43 // pred_region
          %349 = sst [smem:[#allocation10]] [#allocation19]
          %350 = sst [smem:[#allocation11]] [#allocation18]
        $region64: #{tpu_custom_call.1} parent=43 // pred_fallthru
          _
        %352 = shalt.err (0)
        %s354 = sshll.u32 %s345, 4
        %s355 = int_to_ptr.hbm [resolvable:$true] %s354
        %s356 = sshll.u32 %s346, 4
        %s357 = int_to_ptr.vmem [resolvable:$true] %s356
        %359 = dma.hbm_to_vmem [thread:$0]  %s355, 16, %s357, [#allocation3]
        %s360 = sadd.s32 %s274, 5
        %s361 = sld [smem:[#allocation5 + %s360]]
        %s362 = scalar_lea.hbm %s3, %s361
        %s363 = scalar_lea.vmem [#allocation2], 5
        // Predicated region
        $region65: #{tpu_custom_call.1} parent=43 // pred_check
          _
        $region66: #{tpu_custom_call.1} parent=43 // pred_check_branch
          %365 = sbr.rel target = $region68
        $region67: #{tpu_custom_call.1} parent=43 // pred_region
          %366 = sst [smem:[#allocation10]] [#allocation21]
          %367 = sst [smem:[#allocation11]] [#allocation20]
        $region68: #{tpu_custom_call.1} parent=43 // pred_fallthru
          _
        %369 = shalt.err (0)
        %s371 = sshll.u32 %s362, 4
        %s372 = int_to_ptr.hbm [resolvable:$true] %s371
        %s373 = sshll.u32 %s363, 4
        %s374 = int_to_ptr.vmem [resolvable:$true] %s373
        %376 = dma.hbm_to_vmem [thread:$0]  %s372, 16, %s374, [#allocation3]
        %s377 = sadd.s32 %s274, 6
        %s378 = sld [smem:[#allocation5 + %s377]]
        %s379 = scalar_lea.hbm %s3, %s378
        %s380 = scalar_lea.vmem [#allocation2], 6
        // Predicated region
        $region69: #{tpu_custom_call.1} parent=43 // pred_check
          _
        $region70: #{tpu_custom_call.1} parent=43 // pred_check_branch
          %382 = sbr.rel target = $region72
        $region71: #{tpu_custom_call.1} parent=43 // pred_region
          %383 = sst [smem:[#allocation10]] [#allocation23]
          %384 = sst [smem:[#allocation11]] [#allocation22]
        $region72: #{tpu_custom_call.1} parent=43 // pred_fallthru
          _
        %386 = shalt.err (0)
        %s388 = sshll.u32 %s379, 4
        %s389 = int_to_ptr.hbm [resolvable:$true] %s388
        %s390 = sshll.u32 %s380, 4
        %s391 = int_to_ptr.vmem [resolvable:$true] %s390
        %393 = dma.hbm_to_vmem [thread:$0]  %s389, 16, %s391, [#allocation3]
        %s394 = sadd.s32 %s274, 7
        %s395 = sld [smem:[#allocation5 + %s394]]
        %s396 = scalar_lea.hbm %s3, %s395
        %s397 = scalar_lea.vmem [#allocation2], 7
        // Predicated region
        $region73: #{tpu_custom_call.1} parent=43 // pred_check
          _
        $region74: #{tpu_custom_call.1} parent=43 // pred_check_branch
          %399 = sbr.rel target = $region76
        $region75: #{tpu_custom_call.1} parent=43 // pred_region
          %400 = sst [smem:[#allocation10]] [#allocation25]
          %401 = sst [smem:[#allocation11]] [#allocation24]
        $region76: #{tpu_custom_call.1} parent=43 // pred_fallthru
          _
        %403 = shalt.err (0)
        %s405 = sshll.u32 %s396, 4
        %s406 = int_to_ptr.hbm [resolvable:$true] %s405
        %s407 = sshll.u32 %s397, 4
        %s408 = int_to_ptr.vmem [resolvable:$true] %s407
        %410 = dma.hbm_to_vmem [thread:$0]  %s406, 16, %s408, [#allocation3]
        %s411 = smul.u32 8, 1
        %s412 = sshll.u32 %s411, 4
        %413 = dma.done [#allocation3], %s412
        %v414 = vld [vmem:[#allocation2] sm:$0xff]
        %v415 = vld [vmem:[%s269] sm:$0xff]
        %v416 = vld [vmem:[%s273] sm:$0xff]
        %v417 = vlaneseq
        %v418 = vand.u32 %v417, 127
        %419 = vset.pattern.permute.xlu0 0
        %420 = vperm.xlu0 %419, %v415
        %v421 = vpop.permute.xlu0 %420
        %vm422 = vcmp.eq.s32.totalorder %v421, %v418
        %v423 = vsel %vm422, 1, 0
        %v424 = vcvt.s32.f32 %v423
        %425 = vset.pattern.permute.xlu0 0
        %426 = vperm.xlu0 %425, %v416
        %v427 = vpop.permute.xlu0 %426
        %vm428 = vcmp.eq.s32.totalorder %v427, %v418
        %v429 = vsel %vm428, 1, 0
        %v430 = vcvt.s32.f32 %v429
        %v431 = vld [vmem:[%s4] sm:$0x3]
        %vm432 = vcmask 15360
        %v434 = vsel %vm432, %v424, 0
        %vm436 = vcmask 1041408
        %v438 = vsel %vm436, %v431, 0
        %440 = vmatpush.msra.mxu0 0.0
        %441 = vmatpush.msra.mxu0 0.0
        %442 = vmatpush.msra.mxu0 0.0
        %443 = vmatpush.msra.mxu0 0.0
        %444 = vmatpush.msra.mxu0 0.0
        %445 = vmatpush.msra.mxu0 0.0
        %446 = vmatpush.msra.mxu0 0.0
        %447 = vmatpush.msra.mxu0 0.0
        %448 = vmatpush.msra.mxu0 0.0
        %449 = vmatpush.msra.mxu0 0.0
        %450 = vmatpush.msra.mxu0 0.0
        %451 = vmatpush.msra.mxu0 0.0
        %452 = vmatpush.msra.mxu0 0.0
        %453 = vmatpush.msra.mxu0 0.0
        %454 = vmatpush.msra.mxu0 0.0
        %455 = vmatpush.msra.mxu0 %v438
        %456 = vmatmul.f32.gmra.mxu0 %v434
        %v457 = vpop.f32.mrf.mxu0
        %v458 = vadd.f32 0.0, %v457
        %459 = vdwg.mxu0
        %v460 = vadd.f32 %v414, %v458
        %v461 = vld [vmem:[%s5] sm:$0xff]
        %v462 = vld [vmem:[%s5 + $0x8] sm:$0xff]
        %v463 = vld [vmem:[%s5 + $0x10] sm:$0xff]
        %v464 = vld [vmem:[%s5 + $0x18] sm:$0xff]
        %vm465 = vcmask 261120
        %v467 = vsel %vm465, %v430, 0
        %469 = vmatpush.msra.mxu0 0.0
        %470 = vmatpush.msra.mxu0 0.0
        %471 = vmatpush.msra.mxu0 0.0
        %472 = vmatpush.msra.mxu0 0.0
        %473 = vmatpush.msra.mxu0 0.0
        %474 = vmatpush.msra.mxu0 0.0
        %475 = vmatpush.msra.mxu0 0.0
        %476 = vmatpush.msra.mxu0 0.0
        %477 = vmatpush.msra.mxu0 0.0
        %478 = vmatpush.msra.mxu0 0.0
        %479 = vmatpush.msra.mxu0 0.0
        %480 = vmatpush.msra.mxu0 0.0
        %481 = vmatpush.msra.mxu0 %v464
        %482 = vmatpush.msra.mxu0 %v463
        %483 = vmatpush.msra.mxu0 %v462
        %484 = vmatpush.msra.mxu0 %v461
        %485 = vmatmul.f32.gmra.mxu0 %v467
        %v486 = vpop.f32.mrf.mxu0
        %v487 = vadd.f32 0.0, %v486
        %488 = vdwg.mxu0
        %v489 = vadd.f32 %v460, %v487
        %490 = vadd.xlane.f32.xlu0 %v489
        %v491 = vpop.xlane.xlu0 %490
        %v492 = vrcp.pop 128.0
        %v493 = vmul.f32 128.0, %v492
        %v494 = vsub.f32 1.0, %v493
        %v495 = vmul.f32 %v492, %v494
        %v496 = vadd.f32 %v492, %v495
        %vm497 = vweird.f32 %v492
        %v498 = vsel %vm497, %v492, %v496
        %v499 = vmul.f32 %v491, %v498
        %v500 = vsub.f32 %v489, %v499
        %v501 = vmul.f32 %v500, %v500
        %502 = vadd.xlane.f32.xlu0 %v501
        %v503 = vpop.xlane.xlu0 %502
        %v504 = vmul.f32 %v503, %v498
        %v505 = vadd.f32 %v504, 1e-12
        %v506 = vrsqrt.pop %v505
        %v507 = vmul.f32 %v506, %v505
        %v508 = vmul.f32 %v507, %v506
        %v509 = vmul.f32 0.5, %v508
        %v510 = vsub.f32 1.5, %v509
        %v511 = vmul.f32 %v506, %v510
        %vm512 = vweird.f32 %v505
        %vm513 = vweird.f32 %v506
        %vm514 = vmor %vm512, %vm513
        %v515 = vsel %vm514, %v506, %v511
        %v516 = vmul.f32 %v500, %v515
        %v518 = vperm.slane %v275, 0
        %v520 = vmul.f32 %v516, %v518
        %v522 = vperm.slane %v276, 0
        %v524 = vadd.f32 %v520, %v522
        %525 = vst [vmem:[%s265] sm:$0xff] %v524
        %s526 = sand.u32 %s174, 1
        %s527 = scalar_lea.sflag [#allocation7], %s526
        %s528 = sand.u32 %s174, 1
        %s529 = smul.addr %s528, 8
        %s530 = scalar_lea.vmem [#allocation6], %s529
        // Predicated region
        $region77: #{tpu_custom_call.1} parent=43 // pred_check
          %p531 = pneg %p184
        $region78: #{tpu_custom_call.1} parent=43 // pred_check_branch
          %533 = sbr.rel (%p531) target = $region80
        $region79: #{tpu_custom_call.1} parent=43 // pred_region
          %535 = vsyncadd %s527, 0
          %s536 = smul.addr %s30, 8
          %s537 = scalar_lea.hbm %s8, %s536
          %s539 = sshll.u32 %s530, 4
          %s540 = int_to_ptr.vmem [resolvable:$true] %s539
          %s541 = sshll.u32 %s537, 4
          %s542 = int_to_ptr.hbm [resolvable:$true] %s541
          %544 = dma.vmem_to_hbm [thread:$0]  %s540, 128, %s542, %s527
        $region80: #{tpu_custom_call.1} parent=43 // pred_fallthru
          _
      $region44: #{tpu_custom_call.1} parent=5 // pred_fallthru
        _
      %p545 = scmp.le.s32.totalorder 2, %s25
      // Predicated region
      $region81: #{tpu_custom_call.1} parent=5 // pred_check
        %p546 = pneg %p545
      $region82: #{tpu_custom_call.1} parent=5 // pred_check_branch
        %548 = sbr.rel (%p546) target = $region84
      $region83: #{tpu_custom_call.1} parent=5 // pred_region
        %s549 = ssub.s32 %s25, 2
        // Predicated region
        $region85: #{tpu_custom_call.1} parent=83 // pred_check
          %p550 = pneg %p190
        $region86: #{tpu_custom_call.1} parent=83 // pred_check_branch
          %552 = sbr.rel (%p550) target = $region88
        $region87: #{tpu_custom_call.1} parent=83 // pred_region
          %s553 = sand.u32 %s175, 1
          %s554 = scalar_lea.sflag [#allocation7], %s553
          %s555 = sand.u32 %s175, 1
          %s556 = smul.addr %s555, 8
          %s557 = scalar_lea.vmem [#allocation6], %s556
          %559 = dma.done %s554, 128
        $region88: #{tpu_custom_call.1} parent=83 // pred_fallthru
          _
      $region84: #{tpu_custom_call.1} parent=5 // pred_fallthru
        _
    $region6: #{tpu_custom_call.1} parent=1 // loop_footer
      %s29 = sadd.s32 1, %s25
    $region7: #{tpu_custom_call.1} parent=1 // loop_footer_branch
      %24 = sbr.rel target = $region3
    $region8: #{tpu_custom_call.1} parent=1 // loop_exit
      _
    %560 = vsyncpa [#allocation7], 1
    %s561 = scalar_lea.sflag [#allocation7], 1
    %562 = vsyncpa %s561, 1
  %563 = vsyncmov [#allocation3]
  %s564 = vpop.sfrf %563
  %p565 = scmp.eq.s32.totalorder %s564, 0
  %p566 = pneg %p565
  %568 = shalt.err (%p566)
  %s569 = scalar_lea.sflag [#allocation3], 1
  %570 = vsyncmov %s569
  %s571 = vpop.sfrf %570
  %p572 = scmp.eq.s32.totalorder %s571, 0
  %p573 = pneg %p572
  %575 = shalt.err (%p573)
  %s576 = scalar_lea.sflag [#allocation3], 2
  %577 = vsyncmov %s576
  %s578 = vpop.sfrf %577
  %p579 = scmp.eq.s32.totalorder %s578, 0
  %p580 = pneg %p579
  %582 = shalt.err (%p580)

</llo_original>
